<compile_context>
chip_gen: v7x
topology: tpu7x:2x2x1
jax: 0.10.0
libtpu: 0.0.40
codegen_flags: <defaults>
</compile_context>

<pallas_src>
import functools

import jax
import jax.numpy as jnp
from jax import lax
from jax.experimental import pallas as pl
from jax.experimental.pallas import tpu as pltpu


def _round_up(x, m):
    return ((x + m - 1) // m) * m


def _choose_time_chunk(L, Bp, Ep, Hp):
    """Largest divisor of L that keeps one embedding chunk (and the matching
    pre-activation scratch) within a ~2 MiB per-buffer budget and <= 128 steps."""
    bytes_per_row = Bp * max(Ep, Hp) * 4
    max_rows = max(1, (2 * 1024 * 1024) // bytes_per_row)
    tc = 1
    for d in range(1, L + 1):
        if L % d == 0 and d <= max_rows and d <= 128:
            tc = d
    return tc
    # TODO(synk): if L has no friendly divisor (e.g. a large prime), pad L to a
    # multiple of the chunk and mask the padded timesteps instead of shrinking Tc.


def deep_basic_kernel(emb_ref, wih_ref, whh_ref, b_ref, wfc_ref, bfc_ref,
                      out_ref, h_ref, m_ref, pre_ref):
    """emb_ref: (Tc*Bp, Ep) time-major chunk; wih: (Ep,Hp); whh: (Hp,Hp); b: (1,Hp)
       wfc: (Hp,Cp); bfc: (1,Cp); out: (Bp,Cp)
       h_ref/m_ref: (Bp,Hp) f32 persistent scratch (hidden state / running max)
       pre_ref: (Tc*Bp, Hp) f32 scratch for the hoisted input projection."""
    chunk = pl.program_id(0)
    Bp, Hp = h_ref.shape
    Tc = pre_ref.shape[0] // Bp

    @pl.when(chunk == 0)
    def _():
        h_ref[...] = jnp.zeros_like(h_ref)
        m_ref[...] = jnp.full_like(m_ref, -jnp.inf)   # tanh in [-1,1]: exact max-pool init

    # Hoisted input projection for the whole chunk: one big MXU matmul, bias folded once.
    pre_ref[...] = (jnp.dot(emb_ref[...], wih_ref[...],
                            preferred_element_type=jnp.float32)
                    + b_ref[...])

    whh = whh_ref[...]            # resident (Hp,Hp) weights, loaded once per chunk

    def step(t, carry):
        h, m = carry
        row = pl.multiple_of(t * Bp, 8)
        pre_t = pre_ref[pl.ds(row, Bp), :]                    # (Bp, Hp)
        h_new = jnp.tanh(pre_t + jnp.dot(h, whh, preferred_element_type=jnp.float32))
        return h_new, jnp.maximum(m, h_new)                   # online max-pool over time

    # h / running max live in vregs inside the loop; scratch is touched once per chunk.
    h_fin, m_fin = lax.fori_loop(0, Tc, step, (h_ref[...], m_ref[...]),
                                 unroll=min(Tc, 8))
    h_ref[...] = h_fin
    m_ref[...] = m_fin

    @pl.when(chunk == pl.num_programs(0) - 1)
    def _():
        out_ref[...] = (jnp.dot(m_fin, wfc_ref[...],
                                preferred_element_type=jnp.float32)
                        + bfc_ref[...])


@functools.partial(jax.jit, static_argnames=())
def deep_basic_forward(text, params):
    """text: int32 [B, L] token ids. Returns logits [B, C] (float32)."""
    w_emb = params["w_emb"]        # [V, E]
    w_ih = params["w_ih"]          # [E, H]  (= PyTorch weight_ih_l0.T)
    w_hh = params["w_hh"]          # [H, H]  (= PyTorch weight_hh_l0.T)
    b_rnn = params["b_rnn"]        # [1, H]  (= b_ih + b_hh)
    w_fc = params["w_fc"]          # [H, C]  (= PyTorch fc.weight.T)
    b_fc = params["b_fc"]          # [1, C]

    B, L = text.shape
    E = w_emb.shape[1]
    H = w_hh.shape[0]
    C = w_fc.shape[1]

    # (8,128)-aligned padded sizes (zero padding keeps the math exactly equivalent).
    Bp = _round_up(B, 8)
    Ep = _round_up(E, 128)
    Hp = _round_up(H, 128)
    Cp = _round_up(C, 128)        # lane-dense output; sliced back to C in the wrapper

    f32 = jnp.float32
    w_emb_p = jnp.pad(w_emb.astype(f32), ((0, 0), (0, Ep - E)))
    w_ih_p = jnp.pad(w_ih.astype(f32), ((0, Ep - E), (0, Hp - H)))
    w_hh_p = jnp.pad(w_hh.astype(f32), ((0, Hp - H), (0, Hp - H)))
    b_rnn_p = jnp.pad(b_rnn.astype(f32), ((0, 0), (0, Hp - H)))
    w_fc_p = jnp.pad(w_fc.astype(f32), ((0, Hp - H), (0, Cp - C)))
    b_fc_p = jnp.pad(b_fc.astype(f32), ((0, 0), (0, Cp - C)))

    # Time-major gather straight into a 2-D slab: row index = t*Bp + b.
    # (transpose happens on the tiny int32 id array, not on the embeddings)
    text_p = jnp.pad(text, ((0, Bp - B), (0, 0)))             # pad batch with token 0
    tok_tm = jnp.transpose(text_p, (1, 0)).reshape(L * Bp)
    emb2d = jnp.take(w_emb_p, tok_tm, axis=0)                 # (L*Bp, Ep)
    # TODO(synk): move the gather in-kernel (scalar-prefetched ids + manual DMA from
    # HBM-resident w_emb) to overlap the row fetch with the recurrence.

    Tc = _choose_time_chunk(L, Bp, Ep, Hp)
    n_chunks = L // Tc

    weight_bytes = 4 * (Ep * Hp + Hp * Hp + Hp + Hp * Cp + Cp)
    vmem_bytes = (2 * Tc * Bp * Ep * 4          # double-buffered emb chunk
                  + 2 * weight_bytes            # (conservatively) double-buffered weights
                  + Tc * Bp * Hp * 4            # hoisted-projection scratch
                  + 2 * Bp * Hp * 4             # h + running max
                  + 2 * Bp * Cp * 4)            # output block
    vmem_limit = int(min(max(2 * vmem_bytes, 4 * 1024 * 1024), 48 * 1024 * 1024))

    cost = pl.CostEstimate(
        flops=2 * L * Bp * Hp * (Ep + Hp) + 2 * Bp * Hp * Cp,
        transcendentals=L * Bp * Hp,
        bytes_accessed=L * Bp * Ep * 4 + weight_bytes + Bp * Cp * 4,
    )

    out_p = pl.pallas_call(
        deep_basic_kernel,
        out_shape=jax.ShapeDtypeStruct((Bp, Cp), jnp.float32),
        grid_spec=pltpu.PrefetchScalarGridSpec(
            num_scalar_prefetch=0,
            grid=(n_chunks,),
            in_specs=[
                pl.BlockSpec((Tc * Bp, Ep), lambda t: (t, 0)),   # emb time chunk (pipelined)
                pl.BlockSpec((Ep, Hp), lambda t: (0, 0)),        # W_ih (resident)
                pl.BlockSpec((Hp, Hp), lambda t: (0, 0)),        # W_hh (resident)
                pl.BlockSpec((1, Hp), lambda t: (0, 0)),         # b_ih + b_hh
                pl.BlockSpec((Hp, Cp), lambda t: (0, 0)),        # W_fc (resident)
                pl.BlockSpec((1, Cp), lambda t: (0, 0)),         # b_fc
            ],
            out_specs=pl.BlockSpec((Bp, Cp), lambda t: (0, 0)),
            scratch_shapes=[
                pltpu.VMEM((Bp, Hp), jnp.float32),               # hidden state (persists)
                pltpu.VMEM((Bp, Hp), jnp.float32),               # running max  (persists)
                pltpu.VMEM((Tc * Bp, Hp), jnp.float32),          # hoisted X @ W_ih + b
            ],
        ),
        compiler_params=pltpu.CompilerParams(
            dimension_semantics=("arbitrary",),                  # serial recurrence over time
            vmem_limit_bytes=vmem_limit,
        ),
        cost_estimate=cost,
    )(emb2d, w_ih_p, w_hh_p, b_rnn_p, w_fc_p, b_fc_p)

    return out_p[:B, :C]


def deep_basic_reference(text, params):
    """Pure-JAX reference of the same forward (for correctness checking)."""
    emb = jnp.take(params["w_emb"], text, axis=0)                # [B, L, E]
    B = text.shape[0]
    H = params["w_hh"].shape[0]

    def step(h, x_t):
        h_new = jnp.tanh(x_t @ params["w_ih"] + h @ params["w_hh"] + params["b_rnn"])
        return h_new, h_new

    h0 = jnp.zeros((B, H), jnp.float32)
    _, hs = lax.scan(step, h0, jnp.transpose(emb, (1, 0, 2)))    # [L, B, H]
    pooled = jnp.max(hs, axis=0)                                 # [B, H]
    return pooled @ params["w_fc"] + params["b_fc"]


def make_params(key, vocab, emb_dim, hidden, n_classes):
    ks = jax.random.split(key, 6)
    scale = 0.1
    return {
        "w_emb": scale * jax.random.normal(ks[0], (vocab, emb_dim), jnp.float32),
        "w_ih":  scale * jax.random.normal(ks[1], (emb_dim, hidden), jnp.float32),
        "w_hh":  scale * jax.random.normal(ks[2], (hidden, hidden), jnp.float32),
        "b_rnn": scale * jax.random.normal(ks[3], (1, hidden), jnp.float32),
        "w_fc":  scale * jax.random.normal(ks[4], (hidden, n_classes), jnp.float32),
        "b_fc":  scale * jax.random.normal(ks[5], (1, n_classes), jnp.float32),
    }


if __name__ == "__main__":
    B, L = 2, 8                  # batch, sequence length
    V, E, H, C = 16, 32, 32, 2   # vocab, embedding dim, hidden dim, num classes

    key = jax.random.PRNGKey(0)
    pkey, tkey = jax.random.split(key)
    params = make_params(pkey, V, E, H, C)
    text = jax.random.randint(tkey, (B, L), 0, V, dtype=jnp.int32)

    logits = deep_basic_forward(text, params)
    jax.block_until_ready(logits)
    assert logits.shape == (B, C)

    ref = deep_basic_reference(text, params)
    assert jnp.allclose(logits, ref, rtol=1e-4, atol=1e-4), (
        "max abs err: %g" % float(jnp.max(jnp.abs(logits - ref))))
    print("KERNEL_OK")
</pallas_src>

<mosaic_0001>
module attributes {stable_mosaic.version = 11 : i64} {
  func.func @deep_basic_kernel(%arg0: i32, %arg1: memref<64x128xf32, #tpu.memory_space<vmem>>, %arg2: memref<128x128xf32, #tpu.memory_space<vmem>>, %arg3: memref<128x128xf32, #tpu.memory_space<vmem>>, %arg4: memref<1x128xf32, #tpu.memory_space<vmem>>, %arg5: memref<128x128xf32, #tpu.memory_space<vmem>>, %arg6: memref<1x128xf32, #tpu.memory_space<vmem>>, %arg7: memref<8x128xf32, #tpu.memory_space<vmem>>, %arg8: memref<8x128xf32, #tpu.memory_space<vmem>>, %arg9: memref<8x128xf32, #tpu.memory_space<vmem>>, %arg10: memref<64x128xf32, #tpu.memory_space<vmem>>) attributes {dimension_semantics = [#tpu.dimension_semantics<arbitrary>], iteration_bounds = array<i64: 1>, scalar_prefetch = 0 : i64, scratch_operands = 3 : i64, tpu.core_type = #tpu.core_type<tc>, window_params = [{transform_indices = @transform_0, window_bounds = array<i64: 64, 128>}, {pipeline_mode = #tpu.pipeline_mode<synchronous>, transform_indices = @transform_1, window_bounds = array<i64: 128, 128>}, {pipeline_mode = #tpu.pipeline_mode<synchronous>, transform_indices = @transform_2, window_bounds = array<i64: 128, 128>}, {pipeline_mode = #tpu.pipeline_mode<synchronous>, transform_indices = @transform_3, window_bounds = array<i64: 1, 128>}, {pipeline_mode = #tpu.pipeline_mode<synchronous>, transform_indices = @transform_4, window_bounds = array<i64: 128, 128>}, {pipeline_mode = #tpu.pipeline_mode<synchronous>, transform_indices = @transform_5, window_bounds = array<i64: 1, 128>}, {pipeline_mode = #tpu.pipeline_mode<synchronous>, transform_indices = @transform_6, window_bounds = array<i64: 8, 128>}]} {
    %c0_i32 = arith.constant 0 : i32
    %0 = arith.cmpi eq, %arg0, %c0_i32 : i32
    %1 = arith.extui %0 : i1 to i32
    %c0_i32_0 = arith.constant 0 : i32
    %2 = arith.cmpi ne, %1, %c0_i32_0 : i32
    scf.if %2 {
      %cst_45 = arith.constant 0.000000e+00 : f32
      %82 = vector.broadcast %cst_45 : f32 to vector<8x128xf32>
      %c0_46 = arith.constant 0 : index
      %c0_47 = arith.constant 0 : index
      %83 = vector.load %arg8[%c0_46, %c0_47] : memref<8x128xf32, #tpu.memory_space<vmem>>, vector<8x128xf32>
      tpu.vector_store %arg8[%c0_46, %c0_47], %82 {strides = array<i32>} : memref<8x128xf32, #tpu.memory_space<vmem>>, vector<8x128xf32>,
      %cst_48 = arith.constant 0xFF800000 : f32
      %84 = vector.broadcast %cst_48 : f32 to vector<8x128xf32>
      %c0_49 = arith.constant 0 : index
      %c0_50 = arith.constant 0 : index
      %85 = vector.load %arg9[%c0_49, %c0_50] : memref<8x128xf32, #tpu.memory_space<vmem>>, vector<8x128xf32>
      tpu.vector_store %arg9[%c0_49, %c0_50], %84 {strides = array<i32>} : memref<8x128xf32, #tpu.memory_space<vmem>>, vector<8x128xf32>,
    } else {
    }
    %c0 = arith.constant 0 : index
    %c0_1 = arith.constant 0 : index
    %3 = vector.load %arg1[%c0, %c0_1] : memref<64x128xf32, #tpu.memory_space<vmem>>, vector<64x128xf32>
    %c0_2 = arith.constant 0 : index
    %c0_3 = arith.constant 0 : index
    %4 = vector.load %arg2[%c0_2, %c0_3] : memref<128x128xf32, #tpu.memory_space<vmem>>, vector<128x128xf32>
    %cst = arith.constant dense<0.000000e+00> : vector<64x128xf32>
    %5 = tpu.matmul %3, %4, %cst {dimension_numbers = #tpu.dot_dimension_numbers<[1], [0], [0], [1], [0, 0, 1, 1], [], []>} : vector<64x128xf32>, vector<128x128xf32>, vector<64x128xf32> -> vector<64x128xf32>
    %c0_4 = arith.constant 0 : index
    %c0_5 = arith.constant 0 : index
    %6 = vector.load %arg4[%c0_4, %c0_5] : memref<1x128xf32, #tpu.memory_space<vmem>>, vector<1x128xf32>
    %7 = vector.broadcast %6 : vector<1x128xf32> to vector<64x128xf32>
    %8 = arith.addf %5, %7 : vector<64x128xf32>
    %c0_6 = arith.constant 0 : index
    %c0_7 = arith.constant 0 : index
    %9 = vector.load %arg10[%c0_6, %c0_7] : memref<64x128xf32, #tpu.memory_space<vmem>>, vector<64x128xf32>
    tpu.vector_store %arg10[%c0_6, %c0_7], %8 {strides = array<i32>} : memref<64x128xf32, #tpu.memory_space<vmem>>, vector<64x128xf32>,
    %c0_8 = arith.constant 0 : index
    %c0_9 = arith.constant 0 : index
    %10 = vector.load %arg3[%c0_8, %c0_9] : memref<128x128xf32, #tpu.memory_space<vmem>>, vector<128x128xf32>
    %c0_10 = arith.constant 0 : index
    %c0_11 = arith.constant 0 : index
    %11 = vector.load %arg8[%c0_10, %c0_11] : memref<8x128xf32, #tpu.memory_space<vmem>>, vector<8x128xf32>
    %c0_12 = arith.constant 0 : index
    %c0_13 = arith.constant 0 : index
    %12 = vector.load %arg9[%c0_12, %c0_13] : memref<8x128xf32, #tpu.memory_space<vmem>>, vector<8x128xf32>
    %c0_i32_14 = arith.constant 0 : i32
    %c8_i32 = arith.constant 8 : i32
    %13 = arith.muli %c0_i32_14, %c8_i32 : i32
    %14 = tpu.assume_multiple %13, 8 : i32
    %15 = arith.index_cast %14 : i32 to index
    %c0_15 = arith.constant 0 : index
    %16 = vector.load %arg10[%15, %c0_15] : memref<64x128xf32, #tpu.memory_space<vmem>>, vector<8x128xf32>
    %cst_16 = arith.constant dense<0.000000e+00> : vector<8x128xf32>
    %17 = tpu.matmul %11, %10, %cst_16 {dimension_numbers = #tpu.dot_dimension_numbers<[1], [0], [0], [1], [0, 0, 1, 1], [], []>} : vector<8x128xf32>, vector<128x128xf32>, vector<8x128xf32> -> vector<8x128xf32>
    %18 = arith.addf %16, %17 : vector<8x128xf32>
    %19 = math.tanh %18 : vector<8x128xf32>
    %20 = arith.maximumf %12, %19 : vector<8x128xf32>
    %c1_i32 = arith.constant 1 : i32
    %c8_i32_17 = arith.constant 8 : i32
    %21 = arith.muli %c1_i32, %c8_i32_17 : i32
    %22 = tpu.assume_multiple %21, 8 : i32
    %23 = arith.index_cast %22 : i32 to index
    %c0_18 = arith.constant 0 : index
    %24 = vector.load %arg10[%23, %c0_18] : memref<64x128xf32, #tpu.memory_space<vmem>>, vector<8x128xf32>
    %cst_19 = arith.constant dense<0.000000e+00> : vector<8x128xf32>
    %25 = tpu.matmul %19, %10, %cst_19 {dimension_numbers = #tpu.dot_dimension_numbers<[1], [0], [0], [1], [0, 0, 1, 1], [], []>} : vector<8x128xf32>, vector<128x128xf32>, vector<8x128xf32> -> vector<8x128xf32>
    %26 = arith.addf %24, %25 : vector<8x128xf32>
    %27 = math.tanh %26 : vector<8x128xf32>
    %28 = arith.maximumf %20, %27 : vector<8x128xf32>
    %c2_i32 = arith.constant 2 : i32
    %c8_i32_20 = arith.constant 8 : i32
    %29 = arith.muli %c2_i32, %c8_i32_20 : i32
    %30 = tpu.assume_multiple %29, 8 : i32
    %31 = arith.index_cast %30 : i32 to index
    %c0_21 = arith.constant 0 : index
    %32 = vector.load %arg10[%31, %c0_21] : memref<64x128xf32, #tpu.memory_space<vmem>>, vector<8x128xf32>
    %cst_22 = arith.constant dense<0.000000e+00> : vector<8x128xf32>
    %33 = tpu.matmul %27, %10, %cst_22 {dimension_numbers = #tpu.dot_dimension_numbers<[1], [0], [0], [1], [0, 0, 1, 1], [], []>} : vector<8x128xf32>, vector<128x128xf32>, vector<8x128xf32> -> vector<8x128xf32>
    %34 = arith.addf %32, %33 : vector<8x128xf32>
    %35 = math.tanh %34 : vector<8x128xf32>
    %36 = arith.maximumf %28, %35 : vector<8x128xf32>
    %c3_i32 = arith.constant 3 : i32
    %c8_i32_23 = arith.constant 8 : i32
    %37 = arith.muli %c3_i32, %c8_i32_23 : i32
    %38 = tpu.assume_multiple %37, 8 : i32
    %39 = arith.index_cast %38 : i32 to index
    %c0_24 = arith.constant 0 : index
    %40 = vector.load %arg10[%39, %c0_24] : memref<64x128xf32, #tpu.memory_space<vmem>>, vector<8x128xf32>
    %cst_25 = arith.constant dense<0.000000e+00> : vector<8x128xf32>
    %41 = tpu.matmul %35, %10, %cst_25 {dimension_numbers = #tpu.dot_dimension_numbers<[1], [0], [0], [1], [0, 0, 1, 1], [], []>} : vector<8x128xf32>, vector<128x128xf32>, vector<8x128xf32> -> vector<8x128xf32>
    %42 = arith.addf %40, %41 : vector<8x128xf32>
    %43 = math.tanh %42 : vector<8x128xf32>
    %44 = arith.maximumf %36, %43 : vector<8x128xf32>
    %c4_i32 = arith.constant 4 : i32
    %c8_i32_26 = arith.constant 8 : i32
    %45 = arith.muli %c4_i32, %c8_i32_26 : i32
    %46 = tpu.assume_multiple %45, 8 : i32
    %47 = arith.index_cast %46 : i32 to index
    %c0_27 = arith.constant 0 : index
    %48 = vector.load %arg10[%47, %c0_27] : memref<64x128xf32, #tpu.memory_space<vmem>>, vector<8x128xf32>
    %cst_28 = arith.constant dense<0.000000e+00> : vector<8x128xf32>
    %49 = tpu.matmul %43, %10, %cst_28 {dimension_numbers = #tpu.dot_dimension_numbers<[1], [0], [0], [1], [0, 0, 1, 1], [], []>} : vector<8x128xf32>, vector<128x128xf32>, vector<8x128xf32> -> vector<8x128xf32>
    %50 = arith.addf %48, %49 : vector<8x128xf32>
    %51 = math.tanh %50 : vector<8x128xf32>
    %52 = arith.maximumf %44, %51 : vector<8x128xf32>
    %c5_i32 = arith.constant 5 : i32
    %c8_i32_29 = arith.constant 8 : i32
    %53 = arith.muli %c5_i32, %c8_i32_29 : i32
    %54 = tpu.assume_multiple %53, 8 : i32
    %55 = arith.index_cast %54 : i32 to index
    %c0_30 = arith.constant 0 : index
    %56 = vector.load %arg10[%55, %c0_30] : memref<64x128xf32, #tpu.memory_space<vmem>>, vector<8x128xf32>
    %cst_31 = arith.constant dense<0.000000e+00> : vector<8x128xf32>
    %57 = tpu.matmul %51, %10, %cst_31 {dimension_numbers = #tpu.dot_dimension_numbers<[1], [0], [0], [1], [0, 0, 1, 1], [], []>} : vector<8x128xf32>, vector<128x128xf32>, vector<8x128xf32> -> vector<8x128xf32>
    %58 = arith.addf %56, %57 : vector<8x128xf32>
    %59 = math.tanh %58 : vector<8x128xf32>
    %60 = arith.maximumf %52, %59 : vector<8x128xf32>
    %c6_i32 = arith.constant 6 : i32
    %c8_i32_32 = arith.constant 8 : i32
    %61 = arith.muli %c6_i32, %c8_i32_32 : i32
    %62 = tpu.assume_multiple %61, 8 : i32
    %63 = arith.index_cast %62 : i32 to index
    %c0_33 = arith.constant 0 : index
    %64 = vector.load %arg10[%63, %c0_33] : memref<64x128xf32, #tpu.memory_space<vmem>>, vector<8x128xf32>
    %cst_34 = arith.constant dense<0.000000e+00> : vector<8x128xf32>
    %65 = tpu.matmul %59, %10, %cst_34 {dimension_numbers = #tpu.dot_dimension_numbers<[1], [0], [0], [1], [0, 0, 1, 1], [], []>} : vector<8x128xf32>, vector<128x128xf32>, vector<8x128xf32> -> vector<8x128xf32>
    %66 = arith.addf %64, %65 : vector<8x128xf32>
    %67 = math.tanh %66 : vector<8x128xf32>
    %68 = arith.maximumf %60, %67 : vector<8x128xf32>
    %c7_i32 = arith.constant 7 : i32
    %c8_i32_35 = arith.constant 8 : i32
    %69 = arith.muli %c7_i32, %c8_i32_35 : i32
    %70 = tpu.assume_multiple %69, 8 : i32
    %71 = arith.index_cast %70 : i32 to index
    %c0_36 = arith.constant 0 : index
    %72 = vector.load %arg10[%71, %c0_36] : memref<64x128xf32, #tpu.memory_space<vmem>>, vector<8x128xf32>
    %cst_37 = arith.constant dense<0.000000e+00> : vector<8x128xf32>
    %73 = tpu.matmul %67, %10, %cst_37 {dimension_numbers = #tpu.dot_dimension_numbers<[1], [0], [0], [1], [0, 0, 1, 1], [], []>} : vector<8x128xf32>, vector<128x128xf32>, vector<8x128xf32> -> vector<8x128xf32>
    %74 = arith.addf %72, %73 : vector<8x128xf32>
    %75 = math.tanh %74 : vector<8x128xf32>
    %76 = arith.maximumf %68, %75 : vector<8x128xf32>
    %c8_i32_38 = arith.constant 8 : i32
    %c0_39 = arith.constant 0 : index
    %c0_40 = arith.constant 0 : index
    %77 = vector.load %arg8[%c0_39, %c0_40] : memref<8x128xf32, #tpu.memory_space<vmem>>, vector<8x128xf32>
    tpu.vector_store %arg8[%c0_39, %c0_40], %75 {strides = array<i32>} : memref<8x128xf32, #tpu.memory_space<vmem>>, vector<8x128xf32>,
    %c0_41 = arith.constant 0 : index
    %c0_42 = arith.constant 0 : index
    %78 = vector.load %arg9[%c0_41, %c0_42] : memref<8x128xf32, #tpu.memory_space<vmem>>, vector<8x128xf32>
    tpu.vector_store %arg9[%c0_41, %c0_42], %76 {strides = array<i32>} : memref<8x128xf32, #tpu.memory_space<vmem>>, vector<8x128xf32>,
    %c0_i32_43 = arith.constant 0 : i32
    %79 = arith.cmpi eq, %arg0, %c0_i32_43 : i32
    %80 = arith.extui %79 : i1 to i32
    %c0_i32_44 = arith.constant 0 : i32
    %81 = arith.cmpi ne, %80, %c0_i32_44 : i32
    scf.if %81 {
      %c0_45 = arith.constant 0 : index
      %c0_46 = arith.constant 0 : index
      %82 = vector.load %arg5[%c0_45, %c0_46] : memref<128x128xf32, #tpu.memory_space<vmem>>, vector<128x128xf32>
      %cst_47 = arith.constant dense<0.000000e+00> : vector<8x128xf32>
      %83 = tpu.matmul %76, %82, %cst_47 {dimension_numbers = #tpu.dot_dimension_numbers<[1], [0], [0], [1], [0, 0, 1, 1], [], []>} : vector<8x128xf32>, vector<128x128xf32>, vector<8x128xf32> -> vector<8x128xf32>
      %c0_48 = arith.constant 0 : index
      %c0_49 = arith.constant 0 : index
      %84 = vector.load %arg6[%c0_48, %c0_49] : memref<1x128xf32, #tpu.memory_space<vmem>>, vector<1x128xf32>
      %85 = vector.broadcast %84 : vector<1x128xf32> to vector<8x128xf32>
      %86 = arith.addf %83, %85 : vector<8x128xf32>
      %c0_50 = arith.constant 0 : index
      %c0_51 = arith.constant 0 : index
      %87 = vector.load %arg7[%c0_50, %c0_51] : memref<8x128xf32, #tpu.memory_space<vmem>>, vector<8x128xf32>
      tpu.vector_store %arg7[%c0_50, %c0_51], %86 {strides = array<i32>} : memref<8x128xf32, #tpu.memory_space<vmem>>, vector<8x128xf32>,
    } else {
    }
    return
  }
  func.func @transform_0(%arg0: i32) -> (i32, i32) {
    %c0_i32 = arith.constant 0 : i32
    %c0_i32_0 = arith.constant 0 : i32
    return %arg0, %c0_i32 : i32, i32
  }
  func.func @transform_1(%arg0: i32) -> (i32, i32) {
    %c0_i32 = arith.constant 0 : i32
    %c0_i32_0 = arith.constant 0 : i32
    %c0_i32_1 = arith.constant 0 : i32
    return %c0_i32, %c0_i32_0 : i32, i32
  }
  func.func @transform_2(%arg0: i32) -> (i32, i32) {
    %c0_i32 = arith.constant 0 : i32
    %c0_i32_0 = arith.constant 0 : i32
    %c0_i32_1 = arith.constant 0 : i32
    return %c0_i32, %c0_i32_0 : i32, i32
  }
  func.func @transform_3(%arg0: i32) -> (i32, i32) {
    %c0_i32 = arith.constant 0 : i32
    %c0_i32_0 = arith.constant 0 : i32
    %c0_i32_1 = arith.constant 0 : i32
    return %c0_i32, %c0_i32_0 : i32, i32
  }
  func.func @transform_4(%arg0: i32) -> (i32, i32) {
    %c0_i32 = arith.constant 0 : i32
    %c0_i32_0 = arith.constant 0 : i32
    %c0_i32_1 = arith.constant 0 : i32
    return %c0_i32, %c0_i32_0 : i32, i32
  }
  func.func @transform_5(%arg0: i32) -> (i32, i32) {
    %c0_i32 = arith.constant 0 : i32
    %c0_i32_0 = arith.constant 0 : i32
    %c0_i32_1 = arith.constant 0 : i32
    return %c0_i32, %c0_i32_0 : i32, i32
  }
  func.func @transform_6(%arg0: i32) -> (i32, i32) {
    %c0_i32 = arith.constant 0 : i32
    %c0_i32_0 = arith.constant 0 : i32
    %c0_i32_1 = arith.constant 0 : i32
    return %c0_i32, %c0_i32_0 : i32, i32
  }
}

</mosaic_0001>

<llo_original>
// kernel: deep_basic_forward.1
$region0: #{deep_basic_forward.1}
  #allocation0 [shape = 'u32[]', space=smem, size = 0x4, offset = 0x4, fixed_abs, tag = 'smem constant byte address 0x4 - core index']
  #allocation1 [shape = 'u32[144,128]{1,0:T(1,128)}', space=vmem, size = 0x12000, scoped, tag = 'internal scratch']
  #allocation2 [shape = 'f32[8,128]{1,0:T(8,128)}', space=vmem, size = 0x1000, scoped, tag = 'scratch operand']
  #allocation3 [shape = 'f32[8,128]{1,0:T(8,128)}', space=vmem, size = 0x1000, scoped, tag = 'scratch operand']
  #allocation4 [shape = 'f32[64,128]{1,0:T(8,128)}', space=vmem, size = 0x8000, scoped, tag = 'scratch operand']
  %s0 = inlined_call_operand.vmem [shape: f32[64,128], index: 0, kind: input, shape index: {}]
  %s1 = inlined_call_operand.vmem [shape: f32[128,128], index: 1, kind: input, shape index: {}]
  %s2 = inlined_call_operand.vmem [shape: f32[128,128], index: 2, kind: input, shape index: {}]
  %s3 = inlined_call_operand.vmem [shape: f32[1,128], index: 3, kind: input, shape index: {}]
  %s4 = inlined_call_operand.vmem [shape: f32[128,128], index: 4, kind: input, shape index: {}]
  %s5 = inlined_call_operand.vmem [shape: f32[1,128], index: 5, kind: input, shape index: {}]
  %s6 = inlined_call_operand.vmem [shape: f32[8,128], index: 6, kind: output, shape index: {}]
  %s7 = sld [smem:[#allocation0]]
  $region42: #{deep_basic_forward.1} parent=0
    _
  %s9 = ssub.s32 1, %s7
  %s10 = scalar_select 0, %s9, %s7
  // Predicated region
  $region2: #{deep_basic_forward.1} parent=0 // pred_check
    _
  $region3: #{deep_basic_forward.1} parent=0 // pred_check_branch
    %12 = sbr.rel (0) target = $region5
  $region4: #{deep_basic_forward.1} parent=0 // pred_region
    _
  $region5: #{deep_basic_forward.1} parent=0 // pred_fallthru
    _
  // Predicated region
  $region6: #{deep_basic_forward.1} parent=0 // pred_check
    _
  $region7: #{deep_basic_forward.1} parent=0 // pred_check_branch
    %14 = sbr.rel (0) target = $region9
  $region8: #{deep_basic_forward.1} parent=0 // pred_region
    _
  $region9: #{deep_basic_forward.1} parent=0 // pred_fallthru
    _
  // Predicated region
  $region10: #{deep_basic_forward.1} parent=0 // pred_check
    _
  $region11: #{deep_basic_forward.1} parent=0 // pred_check_branch
    %16 = sbr.rel (0) target = $region13
  $region12: #{deep_basic_forward.1} parent=0 // pred_region
    _
  $region13: #{deep_basic_forward.1} parent=0 // pred_fallthru
    _
  // Predicated region
  $region14: #{deep_basic_forward.1} parent=0 // pred_check
    _
  $region15: #{deep_basic_forward.1} parent=0 // pred_check_branch
    %18 = sbr.rel (0) target = $region17
  $region16: #{deep_basic_forward.1} parent=0 // pred_region
    _
  $region17: #{deep_basic_forward.1} parent=0 // pred_fallthru
    _
  // Predicated region
  $region18: #{deep_basic_forward.1} parent=0 // pred_check
    _
  $region19: #{deep_basic_forward.1} parent=0 // pred_check_branch
    %20 = sbr.rel (0) target = $region21
  $region20: #{deep_basic_forward.1} parent=0 // pred_region
    _
  $region21: #{deep_basic_forward.1} parent=0 // pred_fallthru
    _
  // Predicated region
  $region22: #{deep_basic_forward.1} parent=0 // pred_check
    _
  $region23: #{deep_basic_forward.1} parent=0 // pred_check_branch
    %22 = sbr.rel (0) target = $region25
  $region24: #{deep_basic_forward.1} parent=0 // pred_region
    _
  $region25: #{deep_basic_forward.1} parent=0 // pred_fallthru
    _
  %p23 = scmp.eq.s32.totalorder 0, 0
  // Predicated region
  $region26: #{deep_basic_forward.1} parent=0 // pred_check
    %p24 = pneg %p23
  $region27: #{deep_basic_forward.1} parent=0 // pred_check_branch
    %26 = sbr.rel (%p24) target = $region29
  $region28: #{deep_basic_forward.1} parent=0 // pred_region
    %27 = vst [vmem:[#allocation2] sm:$0xff] 0.0
    %28 = vst [vmem:[#allocation3] sm:$0xff] -inf
  $region29: #{deep_basic_forward.1} parent=0 // pred_fallthru
    _
  %v29 = vld [vmem:[%s0] sm:$0xff]
  %v30 = vld [vmem:[%s0 + $0x8] sm:$0xff]
  %v31 = vld [vmem:[%s0 + $0x10] sm:$0xff]
  %v32 = vld [vmem:[%s0 + $0x18] sm:$0xff]
  %v33 = vld [vmem:[%s0 + $0x20] sm:$0xff]
  %v34 = vld [vmem:[%s0 + $0x28] sm:$0xff]
  %v35 = vld [vmem:[%s0 + $0x30] sm:$0xff]
  %v36 = vld [vmem:[%s0 + $0x38] sm:$0xff]
  %v37 = vld [vmem:[%s1] sm:$0xff]
  %v38 = vld [vmem:[%s1 + $0x8] sm:$0xff]
  %v39 = vld [vmem:[%s1 + $0x10] sm:$0xff]
  %v40 = vld [vmem:[%s1 + $0x18] sm:$0xff]
  %v41 = vld [vmem:[%s1 + $0x20] sm:$0xff]
  %v42 = vld [vmem:[%s1 + $0x28] sm:$0xff]
  %v43 = vld [vmem:[%s1 + $0x30] sm:$0xff]
  %v44 = vld [vmem:[%s1 + $0x38] sm:$0xff]
  %v45 = vld [vmem:[%s1 + $0x40] sm:$0xff]
  %v46 = vld [vmem:[%s1 + $0x48] sm:$0xff]
  %v47 = vld [vmem:[%s1 + $0x50] sm:$0xff]
  %v48 = vld [vmem:[%s1 + $0x58] sm:$0xff]
  %v49 = vld [vmem:[%s1 + $0x60] sm:$0xff]
  %v50 = vld [vmem:[%s1 + $0x68] sm:$0xff]
  %v51 = vld [vmem:[%s1 + $0x70] sm:$0xff]
  %v52 = vld [vmem:[%s1 + $0x78] sm:$0xff]
  %v53 = vld [vmem:[%s3] sm:$0x1]
  %v55 = vlaneseq
  %v56 = vshrl.u32 %v55, 7
  %v57 = vsub.s32 0, %v56
  %v58 = vrot.slane %v53, %v57
  %60 = vmatprep.subr.mxu0 0.0
  %61 = vmatpush1.msra.mxu0 %v37
  %62 = vmatprep.subr.mxu0 0.0
  %63 = vmatpush1.msra.mxu0 %v38
  %64 = vmatprep.subr.mxu0 0.0
  %65 = vmatpush1.msra.mxu0 %v39
  %66 = vmatprep.subr.mxu0 0.0
  %67 = vmatpush1.msra.mxu0 %v40
  %68 = vmatprep.subr.mxu0 0.0
  %69 = vmatpush1.msra.mxu0 %v41
  %70 = vmatprep.subr.mxu0 0.0
  %71 = vmatpush1.msra.mxu0 %v42
  %72 = vmatprep.subr.mxu0 0.0
  %73 = vmatpush1.msra.mxu0 %v43
  %74 = vmatprep.subr.mxu0 0.0
  %75 = vmatpush1.msra.mxu0 %v44
  %76 = vmatprep.subr.mxu0 0.0
  %77 = vmatpush1.msra.mxu0 %v45
  %78 = vmatprep.subr.mxu0 0.0
  %79 = vmatpush1.msra.mxu0 %v46
  %80 = vmatprep.subr.mxu0 0.0
  %81 = vmatpush1.msra.mxu0 %v47
  %82 = vmatprep.subr.mxu0 0.0
  %83 = vmatpush1.msra.mxu0 %v48
  %84 = vmatprep.subr.mxu0 0.0
  %85 = vmatpush1.msra.mxu0 %v49
  %86 = vmatprep.subr.mxu0 0.0
  %87 = vmatpush1.msra.mxu0 %v50
  %88 = vmatprep.subr.mxu0 0.0
  %89 = vmatpush1.msra.mxu0 %v51
  %90 = vmatprep.subr.mxu0 0.0
  %91 = vmatpush1.msra.mxu0 %v52
  %92 = vmatprep.subr.mxu0 0.0
  %93 = vmatpush1.msra.mxu0 0.0
  %94 = vmatprep.subr.mxu0 0.0
  %95 = vmatpush1.msra.mxu0 0.0
  %96 = vmatprep.subr.mxu0 0.0
  %97 = vmatpush1.msra.mxu0 0.0
  %98 = vmatprep.subr.mxu0 0.0
  %99 = vmatpush1.msra.mxu0 0.0
  %100 = vmatprep.subr.mxu0 0.0
  %101 = vmatpush1.msra.mxu0 0.0
  %102 = vmatprep.subr.mxu0 0.0
  %103 = vmatpush1.msra.mxu0 0.0
  %104 = vmatprep.subr.mxu0 0.0
  %105 = vmatpush1.msra.mxu0 0.0
  %106 = vmatprep.subr.mxu0 0.0
  %107 = vmatpush1.msra.mxu0 0.0
  %108 = vmatprep.subr.mxu0 0.0
  %109 = vmatpush1.msra.mxu0 0.0
  %110 = vmatprep.subr.mxu0 0.0
  %111 = vmatpush1.msra.mxu0 0.0
  %112 = vmatprep.subr.mxu0 0.0
  %113 = vmatpush1.msra.mxu0 0.0
  %114 = vmatprep.subr.mxu0 0.0
  %115 = vmatpush1.msra.mxu0 0.0
  %116 = vmatprep.subr.mxu0 0.0
  %117 = vmatpush1.msra.mxu0 0.0
  %118 = vmatprep.subr.mxu0 0.0
  %119 = vmatpush1.msra.mxu0 0.0
  %120 = vmatprep.subr.mxu0 0.0
  %121 = vmatpush1.msra.mxu0 0.0
  %122 = vmatprep.subr.mxu0 0.0
  %123 = vmatpush1.msra.mxu0 0.0
  %124 = vmatprep.mubr.f32.mxu0 0.0
  %125 = vmatmul.mubr.f32.gmra.mrb[0].mxu0 %v29
  %v126 = vpop.f32.mrb[0].mxu0
  %v127 = vadd.f32 %v58, %v126
  %v128 = vpop.f32.mrb[0].mxu0
  %129 = vmatprep.mubr.f32.mxu0 0.0
  %130 = vmatmul.mubr.f32.gmra.mrb[0].mxu0 %v30
  %v131 = vpop.f32.mrb[0].mxu0
  %v132 = vadd.f32 %v58, %v131
  %v133 = vpop.f32.mrb[0].mxu0
  %134 = vmatprep.mubr.f32.mxu0 0.0
  %135 = vmatmul.mubr.f32.gmra.mrb[0].mxu0 %v31
  %v136 = vpop.f32.mrb[0].mxu0
  %v137 = vadd.f32 %v58, %v136
  %v138 = vpop.f32.mrb[0].mxu0
  %139 = vmatprep.mubr.f32.mxu0 0.0
  %140 = vmatmul.mubr.f32.gmra.mrb[0].mxu0 %v32
  %v141 = vpop.f32.mrb[0].mxu0
  %v142 = vadd.f32 %v58, %v141
  %v143 = vpop.f32.mrb[0].mxu0
  %144 = vmatprep.mubr.f32.mxu0 0.0
  %145 = vmatmul.mubr.f32.gmra.mrb[0].mxu0 %v33
  %v146 = vpop.f32.mrb[0].mxu0
  %v147 = vadd.f32 %v58, %v146
  %v148 = vpop.f32.mrb[0].mxu0
  %149 = vmatprep.mubr.f32.mxu0 0.0
  %150 = vmatmul.mubr.f32.gmra.mrb[0].mxu0 %v34
  %v151 = vpop.f32.mrb[0].mxu0
  %v152 = vadd.f32 %v58, %v151
  %v153 = vpop.f32.mrb[0].mxu0
  %154 = vmatprep.mubr.f32.mxu0 0.0
  %155 = vmatmul.mubr.f32.gmra.mrb[0].mxu0 %v35
  %v156 = vpop.f32.mrb[0].mxu0
  %v157 = vadd.f32 %v58, %v156
  %v158 = vpop.f32.mrb[0].mxu0
  %159 = vmatprep.mubr.f32.mxu0 0.0
  %160 = vmatmul.mubr.f32.gmra.mrb[0].mxu0 %v36
  %v161 = vpop.f32.mrb[0].mxu0
  %v162 = vadd.f32 %v58, %v161
  %v163 = vpop.f32.mrb[0].mxu0
  %164 = vdwg.mxu0
  %165 = vst [vmem:[#allocation4] sm:$0xff] %v127
  %166 = vst [vmem:[#allocation4 + $0x8] sm:$0xff] %v132
  %167 = vst [vmem:[#allocation4 + $0x10] sm:$0xff] %v137
  %168 = vst [vmem:[#allocation4 + $0x18] sm:$0xff] %v142
  %169 = vst [vmem:[#allocation4 + $0x20] sm:$0xff] %v147
  %170 = vst [vmem:[#allocation4 + $0x28] sm:$0xff] %v152
  %171 = vst [vmem:[#allocation4 + $0x30] sm:$0xff] %v157
  %172 = vst [vmem:[#allocation4 + $0x38] sm:$0xff] %v162
  %v173 = vld [vmem:[%s2] sm:$0xff]
  %v174 = vld [vmem:[%s2 + $0x8] sm:$0xff]
  %v175 = vld [vmem:[%s2 + $0x10] sm:$0xff]
  %v176 = vld [vmem:[%s2 + $0x18] sm:$0xff]
  %v177 = vld [vmem:[%s2 + $0x20] sm:$0xff]
  %v178 = vld [vmem:[%s2 + $0x28] sm:$0xff]
  %v179 = vld [vmem:[%s2 + $0x30] sm:$0xff]
  %v180 = vld [vmem:[%s2 + $0x38] sm:$0xff]
  %v181 = vld [vmem:[%s2 + $0x40] sm:$0xff]
  %v182 = vld [vmem:[%s2 + $0x48] sm:$0xff]
  %v183 = vld [vmem:[%s2 + $0x50] sm:$0xff]
  %v184 = vld [vmem:[%s2 + $0x58] sm:$0xff]
  %v185 = vld [vmem:[%s2 + $0x60] sm:$0xff]
  %v186 = vld [vmem:[%s2 + $0x68] sm:$0xff]
  %v187 = vld [vmem:[%s2 + $0x70] sm:$0xff]
  %v188 = vld [vmem:[%s2 + $0x78] sm:$0xff]
  %v189 = vld [vmem:[#allocation2] sm:$0xff]
  %v190 = vld [vmem:[#allocation3] sm:$0xff]
  %v191 = vld [vmem:[#allocation4] sm:$0xff]
  %192 = vmatprep.subr.mxu0 0.0
  %193 = vmatpush1.msra.mxu0 %v173
  %194 = vmatprep.subr.mxu0 0.0
  %195 = vmatpush1.msra.mxu0 %v174
  %196 = vmatprep.subr.mxu0 0.0
  %197 = vmatpush1.msra.mxu0 %v175
  %198 = vmatprep.subr.mxu0 0.0
  %199 = vmatpush1.msra.mxu0 %v176
  %200 = vmatprep.subr.mxu0 0.0
  %201 = vmatpush1.msra.mxu0 %v177
  %202 = vmatprep.subr.mxu0 0.0
  %203 = vmatpush1.msra.mxu0 %v178
  %204 = vmatprep.subr.mxu0 0.0
  %205 = vmatpush1.msra.mxu0 %v179
  %206 = vmatprep.subr.mxu0 0.0
  %207 = vmatpush1.msra.mxu0 %v180
  %208 = vmatprep.subr.mxu0 0.0
  %209 = vmatpush1.msra.mxu0 %v181
  %210 = vmatprep.subr.mxu0 0.0
  %211 = vmatpush1.msra.mxu0 %v182
  %212 = vmatprep.subr.mxu0 0.0
  %213 = vmatpush1.msra.mxu0 %v183
  %214 = vmatprep.subr.mxu0 0.0
  %215 = vmatpush1.msra.mxu0 %v184
  %216 = vmatprep.subr.mxu0 0.0
  %217 = vmatpush1.msra.mxu0 %v185
  %218 = vmatprep.subr.mxu0 0.0
  %219 = vmatpush1.msra.mxu0 %v186
  %220 = vmatprep.subr.mxu0 0.0
  %221 = vmatpush1.msra.mxu0 %v187
  %222 = vmatprep.subr.mxu0 0.0
  %223 = vmatpush1.msra.mxu0 %v188
  %224 = vmatprep.subr.mxu0 0.0
  %225 = vmatpush1.msra.mxu0 0.0
  %226 = vmatprep.subr.mxu0 0.0
  %227 = vmatpush1.msra.mxu0 0.0
  %228 = vmatprep.subr.mxu0 0.0
  %229 = vmatpush1.msra.mxu0 0.0
  %230 = vmatprep.subr.mxu0 0.0
  %231 = vmatpush1.msra.mxu0 0.0
  %232 = vmatprep.subr.mxu0 0.0
  %233 = vmatpush1.msra.mxu0 0.0
  %234 = vmatprep.subr.mxu0 0.0
  %235 = vmatpush1.msra.mxu0 0.0
  %236 = vmatprep.subr.mxu0 0.0
  %237 = vmatpush1.msra.mxu0 0.0
  %238 = vmatprep.subr.mxu0 0.0
  %239 = vmatpush1.msra.mxu0 0.0
  %240 = vmatprep.subr.mxu0 0.0
  %241 = vmatpush1.msra.mxu0 0.0
  %242 = vmatprep.subr.mxu0 0.0
  %243 = vmatpush1.msra.mxu0 0.0
  %244 = vmatprep.subr.mxu0 0.0
  %245 = vmatpush1.msra.mxu0 0.0
  %246 = vmatprep.subr.mxu0 0.0
  %247 = vmatpush1.msra.mxu0 0.0
  %248 = vmatprep.subr.mxu0 0.0
  %249 = vmatpush1.msra.mxu0 0.0
  %250 = vmatprep.subr.mxu0 0.0
  %251 = vmatpush1.msra.mxu0 0.0
  %252 = vmatprep.subr.mxu0 0.0
  %253 = vmatpush1.msra.mxu0 0.0
  %254 = vmatprep.subr.mxu0 0.0
  %255 = vmatpush1.msra.mxu0 0.0
  %256 = vmatprep.mubr.f32.mxu0 0.0
  %257 = vmatmul.mubr.f32.gmra.mrb[0].mxu0 %v189
  %v258 = vpop.f32.mrb[0].mxu0
  %v259 = vadd.f32 0.0, %v258
  %v260 = vpop.f32.mrb[0].mxu0
  %261 = vdwg.mxu0
  %v262 = vadd.f32 %v191, %v259
  %v263 = vtanh.pop %v262
  %v264 = vmax.f32 %v190, %v263
  %s265 = scalar_lea.vmem [#allocation4], 8
  %v266 = vld [vmem:[%s265] sm:$0xff]
  %267 = vmatprep.subr.mxu0 0.0
  %268 = vmatpush1.msra.mxu0 %v173
  %269 = vmatprep.subr.mxu0 0.0
  %270 = vmatpush1.msra.mxu0 %v174
  %271 = vmatprep.subr.mxu0 0.0
  %272 = vmatpush1.msra.mxu0 %v175
  %273 = vmatprep.subr.mxu0 0.0
  %274 = vmatpush1.msra.mxu0 %v176
  %275 = vmatprep.subr.mxu0 0.0
  %276 = vmatpush1.msra.mxu0 %v177
  %277 = vmatprep.subr.mxu0 0.0
  %278 = vmatpush1.msra.mxu0 %v178
  %279 = vmatprep.subr.mxu0 0.0
  %280 = vmatpush1.msra.mxu0 %v179
  %281 = vmatprep.subr.mxu0 0.0
  %282 = vmatpush1.msra.mxu0 %v180
  %283 = vmatprep.subr.mxu0 0.0
  %284 = vmatpush1.msra.mxu0 %v181
  %285 = vmatprep.subr.mxu0 0.0
  %286 = vmatpush1.msra.mxu0 %v182
  %287 = vmatprep.subr.mxu0 0.0
  %288 = vmatpush1.msra.mxu0 %v183
  %289 = vmatprep.subr.mxu0 0.0
  %290 = vmatpush1.msra.mxu0 %v184
  %291 = vmatprep.subr.mxu0 0.0
  %292 = vmatpush1.msra.mxu0 %v185
  %293 = vmatprep.subr.mxu0 0.0
  %294 = vmatpush1.msra.mxu0 %v186
  %295 = vmatprep.subr.mxu0 0.0
  %296 = vmatpush1.msra.mxu0 %v187
  %297 = vmatprep.subr.mxu0 0.0
  %298 = vmatpush1.msra.mxu0 %v188
  %299 = vmatprep.subr.mxu0 0.0
  %300 = vmatpush1.msra.mxu0 0.0
  %301 = vmatprep.subr.mxu0 0.0
  %302 = vmatpush1.msra.mxu0 0.0
  %303 = vmatprep.subr.mxu0 0.0
  %304 = vmatpush1.msra.mxu0 0.0
  %305 = vmatprep.subr.mxu0 0.0
  %306 = vmatpush1.msra.mxu0 0.0
  %307 = vmatprep.subr.mxu0 0.0
  %308 = vmatpush1.msra.mxu0 0.0
  %309 = vmatprep.subr.mxu0 0.0
  %310 = vmatpush1.msra.mxu0 0.0
  %311 = vmatprep.subr.mxu0 0.0
  %312 = vmatpush1.msra.mxu0 0.0
  %313 = vmatprep.subr.mxu0 0.0
  %314 = vmatpush1.msra.mxu0 0.0
  %315 = vmatprep.subr.mxu0 0.0
  %316 = vmatpush1.msra.mxu0 0.0
  %317 = vmatprep.subr.mxu0 0.0
  %318 = vmatpush1.msra.mxu0 0.0
  %319 = vmatprep.subr.mxu0 0.0
  %320 = vmatpush1.msra.mxu0 0.0
  %321 = vmatprep.subr.mxu0 0.0
  %322 = vmatpush1.msra.mxu0 0.0
  %323 = vmatprep.subr.mxu0 0.0
  %324 = vmatpush1.msra.mxu0 0.0
  %325 = vmatprep.subr.mxu0 0.0
  %326 = vmatpush1.msra.mxu0 0.0
  %327 = vmatprep.subr.mxu0 0.0
  %328 = vmatpush1.msra.mxu0 0.0
  %329 = vmatprep.subr.mxu0 0.0
  %330 = vmatpush1.msra.mxu0 0.0
  %331 = vmatprep.mubr.f32.mxu0 0.0
  %332 = vmatmul.mubr.f32.gmra.mrb[0].mxu0 %v263
  %v333 = vpop.f32.mrb[0].mxu0
  %v334 = vadd.f32 0.0, %v333
  %v335 = vpop.f32.mrb[0].mxu0
  %336 = vdwg.mxu0
  %v337 = vadd.f32 %v266, %v334
  %v338 = vtanh.pop %v337
  %v339 = vmax.f32 %v264, %v338
  %s340 = scalar_lea.vmem [#allocation4], 16
  %v341 = vld [vmem:[%s340] sm:$0xff]
  %342 = vmatprep.subr.mxu0 0.0
  %343 = vmatpush1.msra.mxu0 %v173
  %344 = vmatprep.subr.mxu0 0.0
  %345 = vmatpush1.msra.mxu0 %v174
  %346 = vmatprep.subr.mxu0 0.0
  %347 = vmatpush1.msra.mxu0 %v175
  %348 = vmatprep.subr.mxu0 0.0
  %349 = vmatpush1.msra.mxu0 %v176
  %350 = vmatprep.subr.mxu0 0.0
  %351 = vmatpush1.msra.mxu0 %v177
  %352 = vmatprep.subr.mxu0 0.0
  %353 = vmatpush1.msra.mxu0 %v178
  %354 = vmatprep.subr.mxu0 0.0
  %355 = vmatpush1.msra.mxu0 %v179
  %356 = vmatprep.subr.mxu0 0.0
  %357 = vmatpush1.msra.mxu0 %v180
  %358 = vmatprep.subr.mxu0 0.0
  %359 = vmatpush1.msra.mxu0 %v181
  %360 = vmatprep.subr.mxu0 0.0
  %361 = vmatpush1.msra.mxu0 %v182
  %362 = vmatprep.subr.mxu0 0.0
  %363 = vmatpush1.msra.mxu0 %v183
  %364 = vmatprep.subr.mxu0 0.0
  %365 = vmatpush1.msra.mxu0 %v184
  %366 = vmatprep.subr.mxu0 0.0
  %367 = vmatpush1.msra.mxu0 %v185
  %368 = vmatprep.subr.mxu0 0.0
  %369 = vmatpush1.msra.mxu0 %v186
  %370 = vmatprep.subr.mxu0 0.0
  %371 = vmatpush1.msra.mxu0 %v187
  %372 = vmatprep.subr.mxu0 0.0
  %373 = vmatpush1.msra.mxu0 %v188
  %374 = vmatprep.subr.mxu0 0.0
  %375 = vmatpush1.msra.mxu0 0.0
  %376 = vmatprep.subr.mxu0 0.0
  %377 = vmatpush1.msra.mxu0 0.0
  %378 = vmatprep.subr.mxu0 0.0
  %379 = vmatpush1.msra.mxu0 0.0
  %380 = vmatprep.subr.mxu0 0.0
  %381 = vmatpush1.msra.mxu0 0.0
  %382 = vmatprep.subr.mxu0 0.0
  %383 = vmatpush1.msra.mxu0 0.0
  %384 = vmatprep.subr.mxu0 0.0
  %385 = vmatpush1.msra.mxu0 0.0
  %386 = vmatprep.subr.mxu0 0.0
  %387 = vmatpush1.msra.mxu0 0.0
  %388 = vmatprep.subr.mxu0 0.0
  %389 = vmatpush1.msra.mxu0 0.0
  %390 = vmatprep.subr.mxu0 0.0
  %391 = vmatpush1.msra.mxu0 0.0
  %392 = vmatprep.subr.mxu0 0.0
  %393 = vmatpush1.msra.mxu0 0.0
  %394 = vmatprep.subr.mxu0 0.0
  %395 = vmatpush1.msra.mxu0 0.0
  %396 = vmatprep.subr.mxu0 0.0
  %397 = vmatpush1.msra.mxu0 0.0
  %398 = vmatprep.subr.mxu0 0.0
  %399 = vmatpush1.msra.mxu0 0.0
  %400 = vmatprep.subr.mxu0 0.0
  %401 = vmatpush1.msra.mxu0 0.0
  %402 = vmatprep.subr.mxu0 0.0
  %403 = vmatpush1.msra.mxu0 0.0
  %404 = vmatprep.subr.mxu0 0.0
  %405 = vmatpush1.msra.mxu0 0.0
  %406 = vmatprep.mubr.f32.mxu0 0.0
  %407 = vmatmul.mubr.f32.gmra.mrb[0].mxu0 %v338
  %v408 = vpop.f32.mrb[0].mxu0
  %v409 = vadd.f32 0.0, %v408
  %v410 = vpop.f32.mrb[0].mxu0
  %411 = vdwg.mxu0
  %v412 = vadd.f32 %v341, %v409
  %v413 = vtanh.pop %v412
  %v414 = vmax.f32 %v339, %v413
  %s415 = scalar_lea.vmem [#allocation4], 24
  %v416 = vld [vmem:[%s415] sm:$0xff]
  %417 = vmatprep.subr.mxu0 0.0
  %418 = vmatpush1.msra.mxu0 %v173
  %419 = vmatprep.subr.mxu0 0.0
  %420 = vmatpush1.msra.mxu0 %v174
  %421 = vmatprep.subr.mxu0 0.0
  %422 = vmatpush1.msra.mxu0 %v175
  %423 = vmatprep.subr.mxu0 0.0
  %424 = vmatpush1.msra.mxu0 %v176
  %425 = vmatprep.subr.mxu0 0.0
  %426 = vmatpush1.msra.mxu0 %v177
  %427 = vmatprep.subr.mxu0 0.0
  %428 = vmatpush1.msra.mxu0 %v178
  %429 = vmatprep.subr.mxu0 0.0
  %430 = vmatpush1.msra.mxu0 %v179
  %431 = vmatprep.subr.mxu0 0.0
  %432 = vmatpush1.msra.mxu0 %v180
  %433 = vmatprep.subr.mxu0 0.0
  %434 = vmatpush1.msra.mxu0 %v181
  %435 = vmatprep.subr.mxu0 0.0
  %436 = vmatpush1.msra.mxu0 %v182
  %437 = vmatprep.subr.mxu0 0.0
  %438 = vmatpush1.msra.mxu0 %v183
  %439 = vmatprep.subr.mxu0 0.0
  %440 = vmatpush1.msra.mxu0 %v184
  %441 = vmatprep.subr.mxu0 0.0
  %442 = vmatpush1.msra.mxu0 %v185
  %443 = vmatprep.subr.mxu0 0.0
  %444 = vmatpush1.msra.mxu0 %v186
  %445 = vmatprep.subr.mxu0 0.0
  %446 = vmatpush1.msra.mxu0 %v187
  %447 = vmatprep.subr.mxu0 0.0
  %448 = vmatpush1.msra.mxu0 %v188
  %449 = vmatprep.subr.mxu0 0.0
  %450 = vmatpush1.msra.mxu0 0.0
  %451 = vmatprep.subr.mxu0 0.0
  %452 = vmatpush1.msra.mxu0 0.0
  %453 = vmatprep.subr.mxu0 0.0
  %454 = vmatpush1.msra.mxu0 0.0
  %455 = vmatprep.subr.mxu0 0.0
  %456 = vmatpush1.msra.mxu0 0.0
  %457 = vmatprep.subr.mxu0 0.0
  %458 = vmatpush1.msra.mxu0 0.0
  %459 = vmatprep.subr.mxu0 0.0
  %460 = vmatpush1.msra.mxu0 0.0
  %461 = vmatprep.subr.mxu0 0.0
  %462 = vmatpush1.msra.mxu0 0.0
  %463 = vmatprep.subr.mxu0 0.0
  %464 = vmatpush1.msra.mxu0 0.0
  %465 = vmatprep.subr.mxu0 0.0
  %466 = vmatpush1.msra.mxu0 0.0
  %467 = vmatprep.subr.mxu0 0.0
  %468 = vmatpush1.msra.mxu0 0.0
  %469 = vmatprep.subr.mxu0 0.0
  %470 = vmatpush1.msra.mxu0 0.0
  %471 = vmatprep.subr.mxu0 0.0
  %472 = vmatpush1.msra.mxu0 0.0
  %473 = vmatprep.subr.mxu0 0.0
  %474 = vmatpush1.msra.mxu0 0.0
  %475 = vmatprep.subr.mxu0 0.0
  %476 = vmatpush1.msra.mxu0 0.0
  %477 = vmatprep.subr.mxu0 0.0
  %478 = vmatpush1.msra.mxu0 0.0
  %479 = vmatprep.subr.mxu0 0.0
  %480 = vmatpush1.msra.mxu0 0.0
  %481 = vmatprep.mubr.f32.mxu0 0.0
  %482 = vmatmul.mubr.f32.gmra.mrb[0].mxu0 %v413
  %v483 = vpop.f32.mrb[0].mxu0
  %v484 = vadd.f32 0.0, %v483
  %v485 = vpop.f32.mrb[0].mxu0
  %486 = vdwg.mxu0
  %v487 = vadd.f32 %v416, %v484
  %v488 = vtanh.pop %v487
  %v489 = vmax.f32 %v414, %v488
  %s490 = scalar_lea.vmem [#allocation4], 32
  %v491 = vld [vmem:[%s490] sm:$0xff]
  %492 = vmatprep.subr.mxu0 0.0
  %493 = vmatpush1.msra.mxu0 %v173
  %494 = vmatprep.subr.mxu0 0.0
  %495 = vmatpush1.msra.mxu0 %v174
  %496 = vmatprep.subr.mxu0 0.0
  %497 = vmatpush1.msra.mxu0 %v175
  %498 = vmatprep.subr.mxu0 0.0
  %499 = vmatpush1.msra.mxu0 %v176
  %500 = vmatprep.subr.mxu0 0.0
  %501 = vmatpush1.msra.mxu0 %v177
  %502 = vmatprep.subr.mxu0 0.0
  %503 = vmatpush1.msra.mxu0 %v178
  %504 = vmatprep.subr.mxu0 0.0
  %505 = vmatpush1.msra.mxu0 %v179
  %506 = vmatprep.subr.mxu0 0.0
  %507 = vmatpush1.msra.mxu0 %v180
  %508 = vmatprep.subr.mxu0 0.0
  %509 = vmatpush1.msra.mxu0 %v181
  %510 = vmatprep.subr.mxu0 0.0
  %511 = vmatpush1.msra.mxu0 %v182
  %512 = vmatprep.subr.mxu0 0.0
  %513 = vmatpush1.msra.mxu0 %v183
  %514 = vmatprep.subr.mxu0 0.0
  %515 = vmatpush1.msra.mxu0 %v184
  %516 = vmatprep.subr.mxu0 0.0
  %517 = vmatpush1.msra.mxu0 %v185
  %518 = vmatprep.subr.mxu0 0.0
  %519 = vmatpush1.msra.mxu0 %v186
  %520 = vmatprep.subr.mxu0 0.0
  %521 = vmatpush1.msra.mxu0 %v187
  %522 = vmatprep.subr.mxu0 0.0
  %523 = vmatpush1.msra.mxu0 %v188
  %524 = vmatprep.subr.mxu0 0.0
  %525 = vmatpush1.msra.mxu0 0.0
  %526 = vmatprep.subr.mxu0 0.0
  %527 = vmatpush1.msra.mxu0 0.0
  %528 = vmatprep.subr.mxu0 0.0
  %529 = vmatpush1.msra.mxu0 0.0
  %530 = vmatprep.subr.mxu0 0.0
  %531 = vmatpush1.msra.mxu0 0.0
  %532 = vmatprep.subr.mxu0 0.0
  %533 = vmatpush1.msra.mxu0 0.0
  %534 = vmatprep.subr.mxu0 0.0
  %535 = vmatpush1.msra.mxu0 0.0
  %536 = vmatprep.subr.mxu0 0.0
  %537 = vmatpush1.msra.mxu0 0.0
  %538 = vmatprep.subr.mxu0 0.0
  %539 = vmatpush1.msra.mxu0 0.0
  %540 = vmatprep.subr.mxu0 0.0
  %541 = vmatpush1.msra.mxu0 0.0
  %542 = vmatprep.subr.mxu0 0.0
  %543 = vmatpush1.msra.mxu0 0.0
  %544 = vmatprep.subr.mxu0 0.0
  %545 = vmatpush1.msra.mxu0 0.0
  %546 = vmatprep.subr.mxu0 0.0
  %547 = vmatpush1.msra.mxu0 0.0
  %548 = vmatprep.subr.mxu0 0.0
  %549 = vmatpush1.msra.mxu0 0.0
  %550 = vmatprep.subr.mxu0 0.0
  %551 = vmatpush1.msra.mxu0 0.0
  %552 = vmatprep.subr.mxu0 0.0
  %553 = vmatpush1.msra.mxu0 0.0
  %554 = vmatprep.subr.mxu0 0.0
  %555 = vmatpush1.msra.mxu0 0.0
  %556 = vmatprep.mubr.f32.mxu0 0.0
  %557 = vmatmul.mubr.f32.gmra.mrb[0].mxu0 %v488
  %v558 = vpop.f32.mrb[0].mxu0
  %v559 = vadd.f32 0.0, %v558
  %v560 = vpop.f32.mrb[0].mxu0
  %561 = vdwg.mxu0
  %v562 = vadd.f32 %v491, %v559
  %v563 = vtanh.pop %v562
  %v564 = vmax.f32 %v489, %v563
  %s565 = scalar_lea.vmem [#allocation4], 40
  %v566 = vld [vmem:[%s565] sm:$0xff]
  %567 = vmatprep.subr.mxu0 0.0
  %568 = vmatpush1.msra.mxu0 %v173
  %569 = vmatprep.subr.mxu0 0.0
  %570 = vmatpush1.msra.mxu0 %v174
  %571 = vmatprep.subr.mxu0 0.0
  %572 = vmatpush1.msra.mxu0 %v175
  %573 = vmatprep.subr.mxu0 0.0
  %574 = vmatpush1.msra.mxu0 %v176
  %575 = vmatprep.subr.mxu0 0.0
  %576 = vmatpush1.msra.mxu0 %v177
  %577 = vmatprep.subr.mxu0 0.0
  %578 = vmatpush1.msra.mxu0 %v178
  %579 = vmatprep.subr.mxu0 0.0
  %580 = vmatpush1.msra.mxu0 %v179
  %581 = vmatprep.subr.mxu0 0.0
  %582 = vmatpush1.msra.mxu0 %v180
  %583 = vmatprep.subr.mxu0 0.0
  %584 = vmatpush1.msra.mxu0 %v181
  %585 = vmatprep.subr.mxu0 0.0
  %586 = vmatpush1.msra.mxu0 %v182
  %587 = vmatprep.subr.mxu0 0.0
  %588 = vmatpush1.msra.mxu0 %v183
  %589 = vmatprep.subr.mxu0 0.0
  %590 = vmatpush1.msra.mxu0 %v184
  %591 = vmatprep.subr.mxu0 0.0
  %592 = vmatpush1.msra.mxu0 %v185
  %593 = vmatprep.subr.mxu0 0.0
  %594 = vmatpush1.msra.mxu0 %v186
  %595 = vmatprep.subr.mxu0 0.0
  %596 = vmatpush1.msra.mxu0 %v187
  %597 = vmatprep.subr.mxu0 0.0
  %598 = vmatpush1.msra.mxu0 %v188
  %599 = vmatprep.subr.mxu0 0.0
  %600 = vmatpush1.msra.mxu0 0.0
  %601 = vmatprep.subr.mxu0 0.0
  %602 = vmatpush1.msra.mxu0 0.0
  %603 = vmatprep.subr.mxu0 0.0
  %604 = vmatpush1.msra.mxu0 0.0
  %605 = vmatprep.subr.mxu0 0.0
  %606 = vmatpush1.msra.mxu0 0.0
  %607 = vmatprep.subr.mxu0 0.0
  %608 = vmatpush1.msra.mxu0 0.0
  %609 = vmatprep.subr.mxu0 0.0
  %610 = vmatpush1.msra.mxu0 0.0
  %611 = vmatprep.subr.mxu0 0.0
  %612 = vmatpush1.msra.mxu0 0.0
  %613 = vmatprep.subr.mxu0 0.0
  %614 = vmatpush1.msra.mxu0 0.0
  %615 = vmatprep.subr.mxu0 0.0
  %616 = vmatpush1.msra.mxu0 0.0
  %617 = vmatprep.subr.mxu0 0.0
  %618 = vmatpush1.msra.mxu0 0.0
  %619 = vmatprep.subr.mxu0 0.0
  %620 = vmatpush1.msra.mxu0 0.0
  %621 = vmatprep.subr.mxu0 0.0
  %622 = vmatpush1.msra.mxu0 0.0
  %623 = vmatprep.subr.mxu0 0.0
  %624 = vmatpush1.msra.mxu0 0.0
  %625 = vmatprep.subr.mxu0 0.0
  %626 = vmatpush1.msra.mxu0 0.0
  %627 = vmatprep.subr.mxu0 0.0
  %628 = vmatpush1.msra.mxu0 0.0
  %629 = vmatprep.subr.mxu0 0.0
  %630 = vmatpush1.msra.mxu0 0.0
  %631 = vmatprep.mubr.f32.mxu0 0.0
  %632 = vmatmul.mubr.f32.gmra.mrb[0].mxu0 %v563
  %v633 = vpop.f32.mrb[0].mxu0
  %v634 = vadd.f32 0.0, %v633
  %v635 = vpop.f32.mrb[0].mxu0
  %636 = vdwg.mxu0
  %v637 = vadd.f32 %v566, %v634
  %v638 = vtanh.pop %v637
  %v639 = vmax.f32 %v564, %v638
  %s640 = scalar_lea.vmem [#allocation4], 48
  %v641 = vld [vmem:[%s640] sm:$0xff]
  %642 = vmatprep.subr.mxu0 0.0
  %643 = vmatpush1.msra.mxu0 %v173
  %644 = vmatprep.subr.mxu0 0.0
  %645 = vmatpush1.msra.mxu0 %v174
  %646 = vmatprep.subr.mxu0 0.0
  %647 = vmatpush1.msra.mxu0 %v175
  %648 = vmatprep.subr.mxu0 0.0
  %649 = vmatpush1.msra.mxu0 %v176
  %650 = vmatprep.subr.mxu0 0.0
  %651 = vmatpush1.msra.mxu0 %v177
  %652 = vmatprep.subr.mxu0 0.0
  %653 = vmatpush1.msra.mxu0 %v178
  %654 = vmatprep.subr.mxu0 0.0
  %655 = vmatpush1.msra.mxu0 %v179
  %656 = vmatprep.subr.mxu0 0.0
  %657 = vmatpush1.msra.mxu0 %v180
  %658 = vmatprep.subr.mxu0 0.0
  %659 = vmatpush1.msra.mxu0 %v181
  %660 = vmatprep.subr.mxu0 0.0
  %661 = vmatpush1.msra.mxu0 %v182
  %662 = vmatprep.subr.mxu0 0.0
  %663 = vmatpush1.msra.mxu0 %v183
  %664 = vmatprep.subr.mxu0 0.0
  %665 = vmatpush1.msra.mxu0 %v184
  %666 = vmatprep.subr.mxu0 0.0
  %667 = vmatpush1.msra.mxu0 %v185
  %668 = vmatprep.subr.mxu0 0.0
  %669 = vmatpush1.msra.mxu0 %v186
  %670 = vmatprep.subr.mxu0 0.0
  %671 = vmatpush1.msra.mxu0 %v187
  %672 = vmatprep.subr.mxu0 0.0
  %673 = vmatpush1.msra.mxu0 %v188
  %674 = vmatprep.subr.mxu0 0.0
  %675 = vmatpush1.msra.mxu0 0.0
  %676 = vmatprep.subr.mxu0 0.0
  %677 = vmatpush1.msra.mxu0 0.0
  %678 = vmatprep.subr.mxu0 0.0
  %679 = vmatpush1.msra.mxu0 0.0
  %680 = vmatprep.subr.mxu0 0.0
  %681 = vmatpush1.msra.mxu0 0.0
  %682 = vmatprep.subr.mxu0 0.0
  %683 = vmatpush1.msra.mxu0 0.0
  %684 = vmatprep.subr.mxu0 0.0
  %685 = vmatpush1.msra.mxu0 0.0
  %686 = vmatprep.subr.mxu0 0.0
  %687 = vmatpush1.msra.mxu0 0.0
  %688 = vmatprep.subr.mxu0 0.0
  %689 = vmatpush1.msra.mxu0 0.0
  %690 = vmatprep.subr.mxu0 0.0
  %691 = vmatpush1.msra.mxu0 0.0
  %692 = vmatprep.subr.mxu0 0.0
  %693 = vmatpush1.msra.mxu0 0.0
  %694 = vmatprep.subr.mxu0 0.0
  %695 = vmatpush1.msra.mxu0 0.0
  %696 = vmatprep.subr.mxu0 0.0
  %697 = vmatpush1.msra.mxu0 0.0
  %698 = vmatprep.subr.mxu0 0.0
  %699 = vmatpush1.msra.mxu0 0.0
  %700 = vmatprep.subr.mxu0 0.0
  %701 = vmatpush1.msra.mxu0 0.0
  %702 = vmatprep.subr.mxu0 0.0
  %703 = vmatpush1.msra.mxu0 0.0
  %704 = vmatprep.subr.mxu0 0.0
  %705 = vmatpush1.msra.mxu0 0.0
  %706 = vmatprep.mubr.f32.mxu0 0.0
  %707 = vmatmul.mubr.f32.gmra.mrb[0].mxu0 %v638
  %v708 = vpop.f32.mrb[0].mxu0
  %v709 = vadd.f32 0.0, %v708
  %v710 = vpop.f32.mrb[0].mxu0
  %711 = vdwg.mxu0
  %v712 = vadd.f32 %v641, %v709
  %v713 = vtanh.pop %v712
  %v714 = vmax.f32 %v639, %v713
  %s715 = scalar_lea.vmem [#allocation4], 56
  %v716 = vld [vmem:[%s715] sm:$0xff]
  %717 = vmatprep.subr.mxu0 0.0
  %718 = vmatpush1.msra.mxu0 %v173
  %719 = vmatprep.subr.mxu0 0.0
  %720 = vmatpush1.msra.mxu0 %v174
  %721 = vmatprep.subr.mxu0 0.0
  %722 = vmatpush1.msra.mxu0 %v175
  %723 = vmatprep.subr.mxu0 0.0
  %724 = vmatpush1.msra.mxu0 %v176
  %725 = vmatprep.subr.mxu0 0.0
  %726 = vmatpush1.msra.mxu0 %v177
  %727 = vmatprep.subr.mxu0 0.0
  %728 = vmatpush1.msra.mxu0 %v178
  %729 = vmatprep.subr.mxu0 0.0
  %730 = vmatpush1.msra.mxu0 %v179
  %731 = vmatprep.subr.mxu0 0.0
  %732 = vmatpush1.msra.mxu0 %v180
  %733 = vmatprep.subr.mxu0 0.0
  %734 = vmatpush1.msra.mxu0 %v181
  %735 = vmatprep.subr.mxu0 0.0
  %736 = vmatpush1.msra.mxu0 %v182
  %737 = vmatprep.subr.mxu0 0.0
  %738 = vmatpush1.msra.mxu0 %v183
  %739 = vmatprep.subr.mxu0 0.0
  %740 = vmatpush1.msra.mxu0 %v184
  %741 = vmatprep.subr.mxu0 0.0
  %742 = vmatpush1.msra.mxu0 %v185
  %743 = vmatprep.subr.mxu0 0.0
  %744 = vmatpush1.msra.mxu0 %v186
  %745 = vmatprep.subr.mxu0 0.0
  %746 = vmatpush1.msra.mxu0 %v187
  %747 = vmatprep.subr.mxu0 0.0
  %748 = vmatpush1.msra.mxu0 %v188
  %749 = vmatprep.subr.mxu0 0.0
  %750 = vmatpush1.msra.mxu0 0.0
  %751 = vmatprep.subr.mxu0 0.0
  %752 = vmatpush1.msra.mxu0 0.0
  %753 = vmatprep.subr.mxu0 0.0
  %754 = vmatpush1.msra.mxu0 0.0
  %755 = vmatprep.subr.mxu0 0.0
  %756 = vmatpush1.msra.mxu0 0.0
  %757 = vmatprep.subr.mxu0 0.0
  %758 = vmatpush1.msra.mxu0 0.0
  %759 = vmatprep.subr.mxu0 0.0
  %760 = vmatpush1.msra.mxu0 0.0
  %761 = vmatprep.subr.mxu0 0.0
  %762 = vmatpush1.msra.mxu0 0.0
  %763 = vmatprep.subr.mxu0 0.0
  %764 = vmatpush1.msra.mxu0 0.0
  %765 = vmatprep.subr.mxu0 0.0
  %766 = vmatpush1.msra.mxu0 0.0
  %767 = vmatprep.subr.mxu0 0.0
  %768 = vmatpush1.msra.mxu0 0.0
  %769 = vmatprep.subr.mxu0 0.0
  %770 = vmatpush1.msra.mxu0 0.0
  %771 = vmatprep.subr.mxu0 0.0
  %772 = vmatpush1.msra.mxu0 0.0
  %773 = vmatprep.subr.mxu0 0.0
  %774 = vmatpush1.msra.mxu0 0.0
  %775 = vmatprep.subr.mxu0 0.0
  %776 = vmatpush1.msra.mxu0 0.0
  %777 = vmatprep.subr.mxu0 0.0
  %778 = vmatpush1.msra.mxu0 0.0
  %779 = vmatprep.subr.mxu0 0.0
  %780 = vmatpush1.msra.mxu0 0.0
  %781 = vmatprep.mubr.f32.mxu0 0.0
  %782 = vmatmul.mubr.f32.gmra.mrb[0].mxu0 %v713
  %v783 = vpop.f32.mrb[0].mxu0
  %v784 = vadd.f32 0.0, %v783
  %v785 = vpop.f32.mrb[0].mxu0
  %786 = vdwg.mxu0
  %v787 = vadd.f32 %v716, %v784
  %v788 = vtanh.pop %v787
  %v789 = vmax.f32 %v714, %v788
  %790 = vst [vmem:[#allocation2] sm:$0xff] %v788
  %791 = vst [vmem:[#allocation3] sm:$0xff] %v789
  // Predicated region
  $region30: #{deep_basic_forward.1} parent=0 // pred_check
    %p792 = pneg %p23
  $region31: #{deep_basic_forward.1} parent=0 // pred_check_branch
    %794 = sbr.rel (%p792) target = $region33
  $region32: #{deep_basic_forward.1} parent=0 // pred_region
    %v795 = vld [vmem:[%s4] sm:$0xff]
    %v796 = vld [vmem:[%s4 + $0x8] sm:$0xff]
    %v797 = vld [vmem:[%s4 + $0x10] sm:$0xff]
    %v798 = vld [vmem:[%s4 + $0x18] sm:$0xff]
    %v799 = vld [vmem:[%s4 + $0x20] sm:$0xff]
    %v800 = vld [vmem:[%s4 + $0x28] sm:$0xff]
    %v801 = vld [vmem:[%s4 + $0x30] sm:$0xff]
    %v802 = vld [vmem:[%s4 + $0x38] sm:$0xff]
    %v803 = vld [vmem:[%s4 + $0x40] sm:$0xff]
    %v804 = vld [vmem:[%s4 + $0x48] sm:$0xff]
    %v805 = vld [vmem:[%s4 + $0x50] sm:$0xff]
    %v806 = vld [vmem:[%s4 + $0x58] sm:$0xff]
    %v807 = vld [vmem:[%s4 + $0x60] sm:$0xff]
    %v808 = vld [vmem:[%s4 + $0x68] sm:$0xff]
    %v809 = vld [vmem:[%s4 + $0x70] sm:$0xff]
    %v810 = vld [vmem:[%s4 + $0x78] sm:$0xff]
    %v811 = vld [vmem:[%s5] sm:$0x1]
    %v813 = vlaneseq
    %v814 = vshrl.u32 %v813, 7
    %v815 = vsub.s32 0, %v814
    %v816 = vrot.slane %v811, %v815
    %818 = vmatprep.subr.mxu0 0.0
    %819 = vmatpush1.msra.mxu0 %v795
    %820 = vmatprep.subr.mxu0 0.0
    %821 = vmatpush1.msra.mxu0 %v796
    %822 = vmatprep.subr.mxu0 0.0
    %823 = vmatpush1.msra.mxu0 %v797
    %824 = vmatprep.subr.mxu0 0.0
    %825 = vmatpush1.msra.mxu0 %v798
    %826 = vmatprep.subr.mxu0 0.0
    %827 = vmatpush1.msra.mxu0 %v799
    %828 = vmatprep.subr.mxu0 0.0
    %829 = vmatpush1.msra.mxu0 %v800
    %830 = vmatprep.subr.mxu0 0.0
    %831 = vmatpush1.msra.mxu0 %v801
    %832 = vmatprep.subr.mxu0 0.0
    %833 = vmatpush1.msra.mxu0 %v802
    %834 = vmatprep.subr.mxu0 0.0
    %835 = vmatpush1.msra.mxu0 %v803
    %836 = vmatprep.subr.mxu0 0.0
    %837 = vmatpush1.msra.mxu0 %v804
    %838 = vmatprep.subr.mxu0 0.0
    %839 = vmatpush1.msra.mxu0 %v805
    %840 = vmatprep.subr.mxu0 0.0
    %841 = vmatpush1.msra.mxu0 %v806
    %842 = vmatprep.subr.mxu0 0.0
    %843 = vmatpush1.msra.mxu0 %v807
    %844 = vmatprep.subr.mxu0 0.0
    %845 = vmatpush1.msra.mxu0 %v808
    %846 = vmatprep.subr.mxu0 0.0
    %847 = vmatpush1.msra.mxu0 %v809
    %848 = vmatprep.subr.mxu0 0.0
    %849 = vmatpush1.msra.mxu0 %v810
    %850 = vmatprep.subr.mxu0 0.0
    %851 = vmatpush1.msra.mxu0 0.0
    %852 = vmatprep.subr.mxu0 0.0
    %853 = vmatpush1.msra.mxu0 0.0
    %854 = vmatprep.subr.mxu0 0.0
    %855 = vmatpush1.msra.mxu0 0.0
    %856 = vmatprep.subr.mxu0 0.0
    %857 = vmatpush1.msra.mxu0 0.0
    %858 = vmatprep.subr.mxu0 0.0
    %859 = vmatpush1.msra.mxu0 0.0
    %860 = vmatprep.subr.mxu0 0.0
    %861 = vmatpush1.msra.mxu0 0.0
    %862 = vmatprep.subr.mxu0 0.0
    %863 = vmatpush1.msra.mxu0 0.0
    %864 = vmatprep.subr.mxu0 0.0
    %865 = vmatpush1.msra.mxu0 0.0
    %866 = vmatprep.subr.mxu0 0.0
    %867 = vmatpush1.msra.mxu0 0.0
    %868 = vmatprep.subr.mxu0 0.0
    %869 = vmatpush1.msra.mxu0 0.0
    %870 = vmatprep.subr.mxu0 0.0
    %871 = vmatpush1.msra.mxu0 0.0
    %872 = vmatprep.subr.mxu0 0.0
    %873 = vmatpush1.msra.mxu0 0.0
    %874 = vmatprep.subr.mxu0 0.0
    %875 = vmatpush1.msra.mxu0 0.0
    %876 = vmatprep.subr.mxu0 0.0
    %877 = vmatpush1.msra.mxu0 0.0
    %878 = vmatprep.subr.mxu0 0.0
    %879 = vmatpush1.msra.mxu0 0.0
    %880 = vmatprep.subr.mxu0 0.0
    %881 = vmatpush1.msra.mxu0 0.0
    %882 = vmatprep.mubr.f32.mxu0 0.0
    %883 = vmatmul.mubr.f32.gmra.mrb[0].mxu0 %v789
    %v884 = vpop.f32.mrb[0].mxu0
    %v885 = vadd.f32 %v816, %v884
    %v886 = vpop.f32.mrb[0].mxu0
    %887 = vdwg.mxu0
    %888 = vst [vmem:[%s6] sm:$0xff] %v885
  $region33: #{deep_basic_forward.1} parent=0 // pred_fallthru
    _
  // Predicated region
  $region34: #{deep_basic_forward.1} parent=0 // pred_check
    _
  $region35: #{deep_basic_forward.1} parent=0 // pred_check_branch
    %890 = sbr.rel (0) target = $region37
  $region36: #{deep_basic_forward.1} parent=0 // pred_region
    _
  $region37: #{deep_basic_forward.1} parent=0 // pred_fallthru
    _
  // Predicated region
  $region38: #{deep_basic_forward.1} parent=0 // pred_check
    _
  $region39: #{deep_basic_forward.1} parent=0 // pred_check_branch
    %892 = sbr.rel (0) target = $region41
  $region40: #{deep_basic_forward.1} parent=0 // pred_region
    _
  $region41: #{deep_basic_forward.1} parent=0 // pred_fallthru
    _

</llo_original>
